<compile_context>
chip_gen: v5e
topology: v5e:2x2
jax: 0.10.0
libtpu: 0.0.40
codegen_flags: <defaults>
</compile_context>

<pallas_src>
import functools

import jax
import jax.numpy as jnp
from jax.experimental import pallas as pl
from jax.experimental.pallas import tpu as pltpu

_LANES = 1024          # lane-dense last dim (multiple of 128)
_MAX_TILE_ROWS = 512   # 512 x 1024 f32 = 2 MiB per buffer


def _round_up(x, n):
    return ((x + n - 1) // n) * n


def _vq_kernel(q_ref, o_ref, *, scale):
    # Pure elementwise VPU work; scale is a compile-time f32 constant.
    q = q_ref[...].astype(jnp.float32)
    o_ref[...] = (scale * q * q).astype(o_ref.dtype)


def vq_forward(q, m, w):
    """Computes 0.5 * m * w**2 * q**2 with a Pallas TPU kernel."""
    orig_shape = q.shape
    orig_dtype = q.dtype
    scale = float(0.5 * float(m) * float(w) ** 2)  # formed in full precision

    n = int(q.size)
    if n == 0:
        return q

    # Sublane-group size for this dtype (8 f32 / 16 bf16 / 32 int8 rows).
    itemsize = jnp.dtype(orig_dtype).itemsize
    sub = {4: 8, 2: 16, 1: 32}.get(itemsize, 8)

    cols = _LANES
    # Pad only up to a whole sublane-group of lane-dense rows (cheap: at most
    # sub*cols - 1 elements), NOT up to a whole tile.
    n_pad = _round_up(n, sub * cols)
    rows_p = n_pad // cols

    flat = q.reshape(-1)
    pad = n_pad - n
    if pad:
        flat = jnp.concatenate([flat, jnp.zeros((pad,), dtype=orig_dtype)])
    slab = flat.reshape(rows_p, cols)

    # Tile rows: as large as possible up to _MAX_TILE_ROWS, always a multiple
    # of the sublane group so the block shape stays (8,128)-aligned.  The last
    # grid block may be partial; Pallas masks the out-of-bounds writes.
    tile_r = min(_MAX_TILE_ROWS, rows_p)
    grid = (pl.cdiv(rows_p, tile_r),)

    out = pl.pallas_call(
        functools.partial(_vq_kernel, scale=scale),
        out_shape=jax.ShapeDtypeStruct((rows_p, cols), orig_dtype),
        grid=grid,
        in_specs=[pl.BlockSpec((tile_r, cols), lambda i: (i, 0))],
        out_specs=pl.BlockSpec((tile_r, cols), lambda i: (i, 0)),
        compiler_params=pltpu.CompilerParams(
            dimension_semantics=("parallel",),
        ),
    )(slab)

    out_flat = out.reshape(-1)
    if pad:
        out_flat = out_flat[:n]
    return out_flat.reshape(orig_shape)


if __name__ == "__main__":
    # Deterministic parameters (module __init__ takes scalars m, w).
    m = 1.5
    w = 2.0

    key = jax.random.PRNGKey(0)
    # Small example input consistent with the shape-agnostic forward.
    q = jax.random.normal(key, (2, 4, 16, 16), dtype=jnp.float32)

    out = jax.block_until_ready(vq_forward(q, m, w))

    # Reference check in plain JAX.
    ref = 0.5 * m * (w ** 2) * q * q
    assert out.shape == q.shape and out.dtype == q.dtype
    assert jnp.allclose(out, ref, atol=1e-6, rtol=1e-6)

    # Also exercise a shape that needs padding / a partial last tile.
    q2 = jax.random.normal(jax.random.PRNGKey(1), (3, 7, 13), dtype=jnp.float32)
    out2 = jax.block_until_ready(vq_forward(q2, m, w))
    ref2 = 0.5 * m * (w ** 2) * q2 * q2
    assert out2.shape == q2.shape and jnp.allclose(out2, ref2, atol=1e-6, rtol=1e-6)

    print("KERNEL_OK")
</pallas_src>

<mosaic_0001>
module attributes {stable_mosaic.version = 11 : i64} {
  func.func @_vq_kernel(%arg0: i32, %arg1: memref<8x1024xf32, #tpu.memory_space<vmem>>, %arg2: memref<8x1024xf32, #tpu.memory_space<vmem>>) attributes {dimension_semantics = [#tpu.dimension_semantics<parallel>], iteration_bounds = array<i64: 1>, scalar_prefetch = 0 : i64, scratch_operands = 0 : i64, tpu.core_type = #tpu.core_type<tc>, window_params = [{transform_indices = @transform_0, window_bounds = array<i64: 8, 1024>}, {transform_indices = @transform_1, window_bounds = array<i64: 8, 1024>}]} {
    %c0 = arith.constant 0 : index
    %c0_0 = arith.constant 0 : index
    %0 = vector.load %arg1[%c0, %c0_0] : memref<8x1024xf32, #tpu.memory_space<vmem>>, vector<8x1024xf32>
    %cst = arith.constant 3.000000e+00 : f32
    %1 = vector.broadcast %cst : f32 to vector<8x1024xf32>
    %2 = arith.mulf %1, %0 : vector<8x1024xf32>
    %3 = arith.mulf %2, %0 : vector<8x1024xf32>
    %c0_1 = arith.constant 0 : index
    %c0_2 = arith.constant 0 : index
    %4 = vector.load %arg2[%c0_1, %c0_2] : memref<8x1024xf32, #tpu.memory_space<vmem>>, vector<8x1024xf32>
    tpu.vector_store %arg2[%c0_1, %c0_2], %3 {strides = array<i32>} : memref<8x1024xf32, #tpu.memory_space<vmem>>, vector<8x1024xf32>,
    return
  }
  func.func @transform_0(%arg0: i32) -> (i32, i32) {
    %c0_i32 = arith.constant 0 : i32
    %c0_i32_0 = arith.constant 0 : i32
    return %arg0, %c0_i32 : i32, i32
  }
  func.func @transform_1(%arg0: i32) -> (i32, i32) {
    %c0_i32 = arith.constant 0 : i32
    %c0_i32_0 = arith.constant 0 : i32
    return %arg0, %c0_i32 : i32, i32
  }
}

</mosaic_0001>

<llo_original>
// kernel: tpu_custom_call.1
$region0: #{tpu_custom_call.1}
  #allocation0 [shape = 'u32[]', space=smem, size = 0x4, offset = 0x4, fixed_abs, tag = 'smem constant byte address 0x4 - core index']
  #allocation1 [shape = 'u32[72,128]{1,0:T(1,128)}', space=vmem, size = 0x9000, scoped, tag = 'internal scratch']
  %s0 = inlined_call_operand.hbm [shape: f32[8,1024], index: 0, kind: input, shape index: {}]
  %s1 = inlined_call_operand.hbm [shape: f32[8,1024], index: 1, kind: output, shape index: {}]
  %s2 = sld [smem:[#allocation0]]
  $region18: #{tpu_custom_call.1} parent=0
    _
  %s4 = ssub.s32 1, %s2
  %s5 = scalar_select 0, %s4, %s2
  $region1: #{tpu_custom_call.1} parent=0
    #allocation2 [shape = 'u8[32768]{0}', space=vmem, size = 0x8000, scoped, tag = 'input window, operand 0, single buffered']
    #allocation3 [shape = 's32[1]{0}', space=sflag, size = 0x4, scoped, tag = 'scoped memory for tpu_custom_call.1']
    #allocation4 [shape = 's32[1]{0}', space=sflag, size = 0x4, scoped, tag = 'scoped memory for tpu_custom_call.1']
    #allocation5 [shape = 'u8[32768]{0}', space=vmem, size = 0x8000, scoped, tag = 'output window, operand 0, single buffered']
    %6 = vsyncpa [#allocation3], 0
    %7 = vsyncpa [#allocation4], 0
    // Predicated region
    $region2: #{tpu_custom_call.1} parent=1 // pred_check
      _
    $region3: #{tpu_custom_call.1} parent=1 // pred_check_branch
      %9 = sbr.rel (0) target = $region5
    $region4: #{tpu_custom_call.1} parent=1 // pred_region
      %11 = vsyncadd [#allocation3], 0
      %s13 = sshll.u32 %s0, 4
      %s14 = int_to_ptr.hbm [resolvable:$true] %s13
      %s15 = sshll.u32 [#allocation2], 4
      %s16 = int_to_ptr.vmem [resolvable:$true] %s15
      %18 = dma.hbm_to_vmem [thread:$0]  %s14, 1024, %s16, [#allocation3]
    $region5: #{tpu_custom_call.1} parent=1 // pred_fallthru
      _
    // Predicated region
    $region6: #{tpu_custom_call.1} parent=1 // pred_check
      _
    $region7: #{tpu_custom_call.1} parent=1 // pred_check_branch
      %20 = sbr.rel (0) target = $region9
    $region8: #{tpu_custom_call.1} parent=1 // pred_region
      %22 = dma.done [#allocation3], 1024
    $region9: #{tpu_custom_call.1} parent=1 // pred_fallthru
      _
    %v23 = vld [vmem:[#allocation2] sm:$0xff]
    %v24 = vld [vmem:[#allocation2 + $0x8] sm:$0xff]
    %v25 = vld [vmem:[#allocation2 + $0x10] sm:$0xff]
    %v26 = vld [vmem:[#allocation2 + $0x18] sm:$0xff]
    %v27 = vld [vmem:[#allocation2 + $0x20] sm:$0xff]
    %v28 = vld [vmem:[#allocation2 + $0x28] sm:$0xff]
    %v29 = vld [vmem:[#allocation2 + $0x30] sm:$0xff]
    %v30 = vld [vmem:[#allocation2 + $0x38] sm:$0xff]
    %v31 = vmul.f32 %v23, 3.0
    %v32 = vmul.f32 %v24, 3.0
    %v33 = vmul.f32 %v25, 3.0
    %v34 = vmul.f32 %v26, 3.0
    %v35 = vmul.f32 %v27, 3.0
    %v36 = vmul.f32 %v28, 3.0
    %v37 = vmul.f32 %v29, 3.0
    %v38 = vmul.f32 %v30, 3.0
    %v39 = vmul.f32 %v31, %v23
    %v40 = vmul.f32 %v32, %v24
    %v41 = vmul.f32 %v33, %v25
    %v42 = vmul.f32 %v34, %v26
    %v43 = vmul.f32 %v35, %v27
    %v44 = vmul.f32 %v36, %v28
    %v45 = vmul.f32 %v37, %v29
    %v46 = vmul.f32 %v38, %v30
    %47 = vst [vmem:[#allocation5] sm:$0xff] %v39
    %48 = vst [vmem:[#allocation5 + $0x8] sm:$0xff] %v40
    %49 = vst [vmem:[#allocation5 + $0x10] sm:$0xff] %v41
    %50 = vst [vmem:[#allocation5 + $0x18] sm:$0xff] %v42
    %51 = vst [vmem:[#allocation5 + $0x20] sm:$0xff] %v43
    %52 = vst [vmem:[#allocation5 + $0x28] sm:$0xff] %v44
    %53 = vst [vmem:[#allocation5 + $0x30] sm:$0xff] %v45
    %54 = vst [vmem:[#allocation5 + $0x38] sm:$0xff] %v46
    // Predicated region
    $region10: #{tpu_custom_call.1} parent=1 // pred_check
      _
    $region11: #{tpu_custom_call.1} parent=1 // pred_check_branch
      %56 = sbr.rel (0) target = $region13
    $region12: #{tpu_custom_call.1} parent=1 // pred_region
      %58 = vsyncadd [#allocation4], 0
      %s60 = sshll.u32 [#allocation5], 4
      %s61 = int_to_ptr.vmem [resolvable:$true] %s60
      %s62 = sshll.u32 %s1, 4
      %s63 = int_to_ptr.hbm [resolvable:$true] %s62
      %65 = dma.vmem_to_hbm [thread:$0]  %s61, 1024, %s63, [#allocation4]
    $region13: #{tpu_custom_call.1} parent=1 // pred_fallthru
      _
    // Predicated region
    $region14: #{tpu_custom_call.1} parent=1 // pred_check
      _
    $region15: #{tpu_custom_call.1} parent=1 // pred_check_branch
      %67 = sbr.rel (0) target = $region17
    $region16: #{tpu_custom_call.1} parent=1 // pred_region
      %69 = dma.done [#allocation4], 1024
    $region17: #{tpu_custom_call.1} parent=1 // pred_fallthru
      _
    %70 = vsyncpa [#allocation3], 1
    %71 = vsyncpa [#allocation4], 1

</llo_original>
